<compile_context>
chip_gen: v5e
topology: v5e:2x2
jax: 0.10.0
libtpu: 0.0.40
codegen_flags: <defaults>
</compile_context>

<pallas_src>
import functools

import jax
import jax.numpy as jnp
from jax.experimental import pallas as pl
from jax.experimental.pallas import tpu as pltpu

F32 = jnp.float32
_PAIRWISE_EPS = 1e-6   # torch.nn.functional.pairwise_distance default eps
_STD_EPS = 1e-8        # the module's constructor adds 1e-8 to std


def _round_up(x, m):
    return ((x + m - 1) // m) * m


def _loss_kernel(TB, Dp, D, B, B_pad, margin):
    """Fused contrastive-Mahalanobis loss kernel: one batch tile per grid step."""
    need_lane_mask = Dp != D
    need_row_mask = B_pad != B
    inv_b = 1.0 / float(B)
    margin = float(margin)

    def kernel(o1_ref, o2_ref, lbl_ref, mean_ref, inv_std_ref, out_ref, acc_ref):
        i = pl.program_id(0)

        @pl.when(i == 0)
        def _init():
            acc_ref[...] = jnp.zeros_like(acc_ref)

        mean = mean_ref[...]          # (1, Dp) -- loaded once per tile
        inv_std = inv_std_ref[...]    # (1, Dp)
        n1 = (o1_ref[...] - mean) * inv_std
        n2 = (o2_ref[...] - mean) * inv_std
        diff = n1 - n2 + _PAIRWISE_EPS
        if need_lane_mask:
            # zero the zero-padded feature lanes so they contribute exactly 0
            lane = jax.lax.broadcasted_iota(jnp.int32, (TB, Dp), 1)
            diff = jnp.where(lane < D, diff, 0.0)
        d2 = jnp.sum(diff * diff, axis=-1, keepdims=True)       # (TB, 1)
        d = jnp.sqrt(d2)
        hinge = jnp.maximum(margin - d, 0.0)                    # relu(margin - d)
        lbl = lbl_ref[...]                                      # (TB, 1)
        per_row = lbl * (d * d) + (1.0 - lbl) * (hinge * hinge)
        if need_row_mask:
            # zero the batch-padding rows
            row = jax.lax.broadcasted_iota(jnp.int32, (TB, 1), 0) + i * TB
            per_row = jnp.where(row < B, per_row, 0.0)
        acc_ref[...] += jnp.sum(per_row, axis=0, keepdims=True)  # (1, 1)

        @pl.when(i == pl.num_programs(0) - 1)
        def _finalize():
            out_ref[...] = acc_ref[...] * inv_b                  # mean over real rows

    return kernel


@functools.partial(jax.jit, static_argnames=("margin",))
def contrastive_loss_mahalanobis(output1, output2, label, mean, std, margin=1.0):
    """JAX/Pallas equivalent of ContrastiveLossMahalanobis.forward.

    `std` is the raw constructor std; the module's `+ 1e-8` is applied here.
    `margin` is a compile-time constant (constructor arg in the PyTorch module).
    """
    B, D = output1.shape
    Dp = _round_up(D, 128)                 # lane-dense feature dim
    B8 = _round_up(B, 8)                   # sublane granularity
    TB = B8 if B8 <= 256 else 256          # batch-tile rows per grid step
    B_pad = _round_up(B8, TB)
    grid = (B_pad // TB,)

    inv_std = 1.0 / (std.astype(F32) + _STD_EPS)   # fold divide -> multiply

    def pad2(x, rows, cols):
        return jnp.pad(x.astype(F32), ((0, rows - x.shape[0]), (0, cols - x.shape[1])))

    o1p = pad2(output1, B_pad, Dp)
    o2p = pad2(output2, B_pad, Dp)
    lblp = pad2(label.astype(F32).reshape(B, 1), B_pad, 1)
    meanp = pad2(mean.astype(F32).reshape(1, D), 1, Dp)
    invp = pad2(inv_std.reshape(1, D), 1, Dp)

    out = pl.pallas_call(
        _loss_kernel(TB, Dp, D, B, B_pad, margin),
        out_shape=jax.ShapeDtypeStruct((1, 1), F32),
        grid_spec=pltpu.PrefetchScalarGridSpec(
            num_scalar_prefetch=0,
            grid=grid,
            in_specs=[
                pl.BlockSpec((TB, Dp), lambda i: (i, 0)),   # output1 tile
                pl.BlockSpec((TB, Dp), lambda i: (i, 0)),   # output2 tile
                pl.BlockSpec((TB, 1), lambda i: (i, 0)),    # label tile
                pl.BlockSpec((1, Dp), lambda i: (0, 0)),    # mean (resident)
                pl.BlockSpec((1, Dp), lambda i: (0, 0)),    # 1/std (resident)
            ],
            out_specs=pl.BlockSpec((1, 1), lambda i: (0, 0)),
            scratch_shapes=[pltpu.VMEM((1, 1), F32)],
        ),
        compiler_params=pltpu.CompilerParams(
            # the single grid axis is a reduction into one scalar -> "arbitrary"
            dimension_semantics=("arbitrary",),
        ),
    )(o1p, o2p, lblp, meanp, invp)
    return out[0, 0]


def _reference(output1, output2, label, mean, std, margin=1.0):
    """Pure-JAX reference matching the PyTorch module (for validation)."""
    std = std + _STD_EPS
    n1 = (output1 - mean) / std
    n2 = (output2 - mean) / std
    d = jnp.sqrt(jnp.sum((n1 - n2 + _PAIRWISE_EPS) ** 2, axis=-1))
    loss = label * d ** 2 + (1.0 - label) * jnp.maximum(margin - d, 0.0) ** 2
    return jnp.mean(loss)


if __name__ == "__main__":
    key = jax.random.PRNGKey(0)
    k1, k2, k3, k4, k5 = jax.random.split(key, 5)
    B, D = 6, 32   # small shapes; exercises both the lane-pad and batch-pad masks
    output1 = jax.random.normal(k1, (B, D), F32)
    output2 = jax.random.normal(k2, (B, D), F32)
    label = jax.random.bernoulli(k3, 0.5, (B,)).astype(F32)
    mean = 0.5 * jax.random.normal(k4, (D,), F32)
    std = 0.5 + jax.random.uniform(k5, (D,), F32)
    margin = 1.0

    loss = contrastive_loss_mahalanobis(output1, output2, label, mean, std, margin=margin)
    loss = jax.block_until_ready(loss)
    ref = _reference(output1, output2, label, mean, std, margin)

    assert loss.shape == () and loss.dtype == jnp.float32
    assert jnp.allclose(loss, ref, rtol=1e-4, atol=1e-5), (float(loss), float(ref))
    print("KERNEL_OK")
</pallas_src>

<mosaic_0001>
module attributes {stable_mosaic.version = 11 : i64} {
  func.func @kernel(%arg0: i32, %arg1: memref<8x128xf32, #tpu.memory_space<vmem>>, %arg2: memref<8x128xf32, #tpu.memory_space<vmem>>, %arg3: memref<8x1xf32, #tpu.memory_space<vmem>>, %arg4: memref<1x128xf32, #tpu.memory_space<vmem>>, %arg5: memref<1x128xf32, #tpu.memory_space<vmem>>, %arg6: memref<1x1xf32, #tpu.memory_space<vmem>>, %arg7: memref<1x1xf32, #tpu.memory_space<vmem>>) attributes {dimension_semantics = [#tpu.dimension_semantics<arbitrary>], iteration_bounds = array<i64: 1>, scalar_prefetch = 0 : i64, scratch_operands = 1 : i64, tpu.core_type = #tpu.core_type<tc>, window_params = [{transform_indices = @transform_0, window_bounds = array<i64: 8, 128>}, {transform_indices = @transform_1, window_bounds = array<i64: 8, 128>}, {transform_indices = @transform_2, window_bounds = array<i64: 8, 1>}, {pipeline_mode = #tpu.pipeline_mode<synchronous>, transform_indices = @transform_3, window_bounds = array<i64: 1, 128>}, {pipeline_mode = #tpu.pipeline_mode<synchronous>, transform_indices = @transform_4, window_bounds = array<i64: 1, 128>}, {pipeline_mode = #tpu.pipeline_mode<synchronous>, transform_indices = @transform_5, window_bounds = array<i64: 1, 1>}]} {
    %c0_i32 = arith.constant 0 : i32
    %0 = arith.cmpi eq, %arg0, %c0_i32 : i32
    %1 = arith.extui %0 : i1 to i32
    %c0_i32_0 = arith.constant 0 : i32
    %2 = arith.cmpi ne, %1, %c0_i32_0 : i32
    scf.if %2 {
      %cst_23 = arith.constant 0.000000e+00 : f32
      %55 = vector.broadcast %cst_23 : f32 to vector<1x1xf32>
      %c0_24 = arith.constant 0 : index
      %c0_25 = arith.constant 0 : index
      %56 = vector.load %arg7[%c0_24, %c0_25] : memref<1x1xf32, #tpu.memory_space<vmem>>, vector<1x1xf32>
      tpu.vector_store %arg7[%c0_24, %c0_25], %55 {strides = array<i32>} : memref<1x1xf32, #tpu.memory_space<vmem>>, vector<1x1xf32>,
    } else {
    }
    %c0 = arith.constant 0 : index
    %c0_1 = arith.constant 0 : index
    %3 = vector.load %arg4[%c0, %c0_1] : memref<1x128xf32, #tpu.memory_space<vmem>>, vector<1x128xf32>
    %c0_2 = arith.constant 0 : index
    %c0_3 = arith.constant 0 : index
    %4 = vector.load %arg5[%c0_2, %c0_3] : memref<1x128xf32, #tpu.memory_space<vmem>>, vector<1x128xf32>
    %c0_4 = arith.constant 0 : index
    %c0_5 = arith.constant 0 : index
    %5 = vector.load %arg1[%c0_4, %c0_5] : memref<8x128xf32, #tpu.memory_space<vmem>>, vector<8x128xf32>
    %6 = vector.broadcast %3 : vector<1x128xf32> to vector<8x128xf32>
    %7 = arith.subf %5, %6 : vector<8x128xf32>
    %8 = vector.broadcast %4 : vector<1x128xf32> to vector<8x128xf32>
    %9 = arith.mulf %7, %8 : vector<8x128xf32>
    %c0_6 = arith.constant 0 : index
    %c0_7 = arith.constant 0 : index
    %10 = vector.load %arg2[%c0_6, %c0_7] : memref<8x128xf32, #tpu.memory_space<vmem>>, vector<8x128xf32>
    %11 = vector.broadcast %3 : vector<1x128xf32> to vector<8x128xf32>
    %12 = arith.subf %10, %11 : vector<8x128xf32>
    %13 = vector.broadcast %4 : vector<1x128xf32> to vector<8x128xf32>
    %14 = arith.mulf %12, %13 : vector<8x128xf32>
    %15 = arith.subf %9, %14 : vector<8x128xf32>
    %cst = arith.constant 9.99999997E-7 : f32
    %16 = vector.broadcast %cst : f32 to vector<8x128xf32>
    %17 = arith.addf %15, %16 : vector<8x128xf32>
    %18 = tpu.iota {dimensions = array<i32: 1>} : vector<8x128xi32>
    %c32_i32 = arith.constant 32 : i32
    %19 = vector.broadcast %c32_i32 : i32 to vector<8x128xi32>
    %20 = arith.cmpi slt, %18, %19 : vector<8x128xi32>
    %cst_8 = arith.constant 0.000000e+00 : f32
    %21 = vector.broadcast %cst_8 : f32 to vector<8x128xf32>
    %22 = arith.select %20, %17, %21 : vector<8x128xi1>, vector<8x128xf32>
    %23 = arith.mulf %22, %22 : vector<8x128xf32>
    %cst_9 = arith.constant dense<0.000000e+00> : vector<8xf32>
    %24 = vector.multi_reduction <add>, %23, %cst_9 [1] : vector<8x128xf32> to vector<8xf32>
    %25 = vector.shape_cast %24 : vector<8xf32> to vector<8x1xf32>
    %26 = math.sqrt %25 : vector<8x1xf32>
    %cst_10 = arith.constant 1.000000e+00 : f32
    %27 = vector.broadcast %cst_10 : f32 to vector<8x1xf32>
    %28 = arith.subf %27, %26 : vector<8x1xf32>
    %cst_11 = arith.constant 0.000000e+00 : f32
    %29 = vector.broadcast %cst_11 : f32 to vector<8x1xf32>
    %30 = arith.maximumf %28, %29 : vector<8x1xf32>
    %c0_12 = arith.constant 0 : index
    %c0_13 = arith.constant 0 : index
    %31 = vector.load %arg3[%c0_12, %c0_13] : memref<8x1xf32, #tpu.memory_space<vmem>>, vector<8x1xf32>
    %32 = arith.mulf %26, %26 : vector<8x1xf32>
    %33 = arith.mulf %31, %32 : vector<8x1xf32>
    %cst_14 = arith.constant 1.000000e+00 : f32
    %34 = vector.broadcast %cst_14 : f32 to vector<8x1xf32>
    %35 = arith.subf %34, %31 : vector<8x1xf32>
    %36 = arith.mulf %30, %30 : vector<8x1xf32>
    %37 = arith.mulf %35, %36 : vector<8x1xf32>
    %38 = arith.addf %33, %37 : vector<8x1xf32>
    %39 = tpu.iota {dimensions = array<i32: 0>} : vector<8x1xi32>
    %c8_i32 = arith.constant 8 : i32
    %40 = arith.muli %arg0, %c8_i32 : i32
    %41 = vector.broadcast %40 : i32 to vector<8x1xi32>
    %42 = arith.addi %39, %41 : vector<8x1xi32>
    %c6_i32 = arith.constant 6 : i32
    %43 = vector.broadcast %c6_i32 : i32 to vector<8x1xi32>
    %44 = arith.cmpi slt, %42, %43 : vector<8x1xi32>
    %cst_15 = arith.constant 0.000000e+00 : f32
    %45 = vector.broadcast %cst_15 : f32 to vector<8x1xf32>
    %46 = arith.select %44, %38, %45 : vector<8x1xi1>, vector<8x1xf32>
    %c0_16 = arith.constant 0 : index
    %c0_17 = arith.constant 0 : index
    %47 = vector.load %arg7[%c0_16, %c0_17] : memref<1x1xf32, #tpu.memory_space<vmem>>, vector<1x1xf32>
    %cst_18 = arith.constant dense<0.000000e+00> : vector<1xf32>
    %48 = vector.multi_reduction <add>, %46, %cst_18 [0] : vector<8x1xf32> to vector<1xf32>
    %49 = vector.shape_cast %48 : vector<1xf32> to vector<1x1xf32>
    %50 = arith.addf %47, %49 : vector<1x1xf32>
    %c0_19 = arith.constant 0 : index
    %c0_20 = arith.constant 0 : index
    %51 = vector.load %arg7[%c0_19, %c0_20] : memref<1x1xf32, #tpu.memory_space<vmem>>, vector<1x1xf32>
    tpu.vector_store %arg7[%c0_19, %c0_20], %50 {strides = array<i32>} : memref<1x1xf32, #tpu.memory_space<vmem>>, vector<1x1xf32>,
    %c0_i32_21 = arith.constant 0 : i32
    %52 = arith.cmpi eq, %arg0, %c0_i32_21 : i32
    %53 = arith.extui %52 : i1 to i32
    %c0_i32_22 = arith.constant 0 : i32
    %54 = arith.cmpi ne, %53, %c0_i32_22 : i32
    scf.if %54 {
      %c0_23 = arith.constant 0 : index
      %c0_24 = arith.constant 0 : index
      %55 = vector.load %arg7[%c0_23, %c0_24] : memref<1x1xf32, #tpu.memory_space<vmem>>, vector<1x1xf32>
      %cst_25 = arith.constant 0.166666672 : f32
      %56 = vector.broadcast %cst_25 : f32 to vector<1x1xf32>
      %57 = arith.mulf %55, %56 : vector<1x1xf32>
      %c0_26 = arith.constant 0 : index
      %c0_27 = arith.constant 0 : index
      %58 = vector.load %arg6[%c0_26, %c0_27] : memref<1x1xf32, #tpu.memory_space<vmem>>, vector<1x1xf32>
      tpu.vector_store %arg6[%c0_26, %c0_27], %57 {strides = array<i32>} : memref<1x1xf32, #tpu.memory_space<vmem>>, vector<1x1xf32>,
    } else {
    }
    return
  }
  func.func @transform_0(%arg0: i32) -> (i32, i32) {
    %c0_i32 = arith.constant 0 : i32
    %c0_i32_0 = arith.constant 0 : i32
    return %arg0, %c0_i32 : i32, i32
  }
  func.func @transform_1(%arg0: i32) -> (i32, i32) {
    %c0_i32 = arith.constant 0 : i32
    %c0_i32_0 = arith.constant 0 : i32
    return %arg0, %c0_i32 : i32, i32
  }
  func.func @transform_2(%arg0: i32) -> (i32, i32) {
    %c0_i32 = arith.constant 0 : i32
    %c0_i32_0 = arith.constant 0 : i32
    return %arg0, %c0_i32 : i32, i32
  }
  func.func @transform_3(%arg0: i32) -> (i32, i32) {
    %c0_i32 = arith.constant 0 : i32
    %c0_i32_0 = arith.constant 0 : i32
    %c0_i32_1 = arith.constant 0 : i32
    return %c0_i32, %c0_i32_0 : i32, i32
  }
  func.func @transform_4(%arg0: i32) -> (i32, i32) {
    %c0_i32 = arith.constant 0 : i32
    %c0_i32_0 = arith.constant 0 : i32
    %c0_i32_1 = arith.constant 0 : i32
    return %c0_i32, %c0_i32_0 : i32, i32
  }
  func.func @transform_5(%arg0: i32) -> (i32, i32) {
    %c0_i32 = arith.constant 0 : i32
    %c0_i32_0 = arith.constant 0 : i32
    %c0_i32_1 = arith.constant 0 : i32
    return %c0_i32, %c0_i32_0 : i32, i32
  }
}

</mosaic_0001>

<llo_original>
// kernel: contrastive_loss_mahalanobis.1
$region0: #{contrastive_loss_mahalanobis.1}
  #allocation0 [shape = 'u32[]', space=smem, size = 0x4, offset = 0x4, fixed_abs, tag = 'smem constant byte address 0x4 - core index']
  #allocation1 [shape = 'u32[72,128]{1,0:T(1,128)}', space=vmem, size = 0x9000, scoped, tag = 'internal scratch']
  #allocation2 [shape = 'f32[1,1]{1,0:T(1,128)}', space=vmem, size = 0x200, scoped, tag = 'scratch operand']
  %s0 = inlined_call_operand.vmem [shape: f32[8,128], index: 0, kind: input, shape index: {}]
  %s1 = inlined_call_operand.vmem [shape: f32[8,128], index: 1, kind: input, shape index: {}]
  %s2 = inlined_call_operand.vmem [shape: f32[8,1], index: 2, kind: input, shape index: {}]
  %s3 = inlined_call_operand.vmem [shape: f32[1,128], index: 3, kind: input, shape index: {}]
  %s4 = inlined_call_operand.vmem [shape: f32[1,128], index: 4, kind: input, shape index: {}]
  %s5 = inlined_call_operand.hbm [shape: f32[1,1], index: 5, kind: output, shape index: {}]
  %s6 = sld [smem:[#allocation0]]
  $region38: #{contrastive_loss_mahalanobis.1} parent=0
    _
  %s8 = ssub.s32 1, %s6
  %s9 = scalar_select 0, %s8, %s6
  $region1: #{contrastive_loss_mahalanobis.1} parent=0
    #allocation3 [shape = 'u8[512]{0}', space=vmem, size = 0x400, scoped, tag = 'output window, operand 0, single buffered']
    #allocation4 [shape = 's32[1]{0}', space=sflag, size = 0x4, scoped, tag = 'scoped memory for contrastive_loss_mahalanobis.1']
    %10 = vsyncpa [#allocation4], 0
    // Predicated region
    $region2: #{contrastive_loss_mahalanobis.1} parent=1 // pred_check
      _
    $region3: #{contrastive_loss_mahalanobis.1} parent=1 // pred_check_branch
      %12 = sbr.rel (0) target = $region5
    $region4: #{contrastive_loss_mahalanobis.1} parent=1 // pred_region
      _
    $region5: #{contrastive_loss_mahalanobis.1} parent=1 // pred_fallthru
      _
    // Predicated region
    $region6: #{contrastive_loss_mahalanobis.1} parent=1 // pred_check
      _
    $region7: #{contrastive_loss_mahalanobis.1} parent=1 // pred_check_branch
      %14 = sbr.rel (0) target = $region9
    $region8: #{contrastive_loss_mahalanobis.1} parent=1 // pred_region
      _
    $region9: #{contrastive_loss_mahalanobis.1} parent=1 // pred_fallthru
      _
    // Predicated region
    $region10: #{contrastive_loss_mahalanobis.1} parent=1 // pred_check
      _
    $region11: #{contrastive_loss_mahalanobis.1} parent=1 // pred_check_branch
      %16 = sbr.rel (0) target = $region13
    $region12: #{contrastive_loss_mahalanobis.1} parent=1 // pred_region
      _
    $region13: #{contrastive_loss_mahalanobis.1} parent=1 // pred_fallthru
      _
    // Predicated region
    $region14: #{contrastive_loss_mahalanobis.1} parent=1 // pred_check
      _
    $region15: #{contrastive_loss_mahalanobis.1} parent=1 // pred_check_branch
      %18 = sbr.rel (0) target = $region17
    $region16: #{contrastive_loss_mahalanobis.1} parent=1 // pred_region
      _
    $region17: #{contrastive_loss_mahalanobis.1} parent=1 // pred_fallthru
      _
    // Predicated region
    $region18: #{contrastive_loss_mahalanobis.1} parent=1 // pred_check
      _
    $region19: #{contrastive_loss_mahalanobis.1} parent=1 // pred_check_branch
      %20 = sbr.rel (0) target = $region21
    $region20: #{contrastive_loss_mahalanobis.1} parent=1 // pred_region
      _
    $region21: #{contrastive_loss_mahalanobis.1} parent=1 // pred_fallthru
      _
    %p21 = scmp.eq.s32.totalorder 0, 0
    // Predicated region
    $region22: #{contrastive_loss_mahalanobis.1} parent=1 // pred_check
      %p22 = pneg %p21
    $region23: #{contrastive_loss_mahalanobis.1} parent=1 // pred_check_branch
      %24 = sbr.rel (%p22) target = $region25
    $region24: #{contrastive_loss_mahalanobis.1} parent=1 // pred_region
      %vm25 = vcmask 0
      %26 = vst.msk [vmem:[#allocation2] sm:$0x1] %vm25, 0.0
    $region25: #{contrastive_loss_mahalanobis.1} parent=1 // pred_fallthru
      _
    %v27 = vld [vmem:[%s3] sm:$0x1]
    %v28 = vld [vmem:[%s4] sm:$0x1]
    %v29 = vld [vmem:[%s0] sm:$0xff]
    %v31 = vperm.slane %v27, 0
    %v33 = vsub.f32 %v29, %v31
    %v35 = vperm.slane %v28, 0
    %v37 = vmul.f32 %v33, %v35
    %v38 = vld [vmem:[%s1] sm:$0xff]
    %v39 = vsub.f32 %v38, %v31
    %v40 = vmul.f32 %v39, %v35
    %v41 = vsub.f32 %v37, %v40
    %v42 = vadd.f32 %v41, 1e-06
    %v43 = vlaneseq
    %v44 = vand.u32 %v43, 127
    %vm45 = vcmp.lt.s32.totalorder %v44, 32
    %v46 = vsel %vm45, %v42, 0.0
    %v47 = vmul.f32 %v46, %v46
    %48 = vadd.xlane.f32.xlu0 %v47
    %v49 = vpop.xlane.xlu0 %48
    %v50 = vrsqrt.pop %v49
    %v51 = vmul.f32 %v50, %v49
    %v52 = vmul.f32 %v51, %v50
    %v53 = vmul.f32 0.5, %v52
    %v54 = vsub.f32 1.5, %v53
    %v55 = vmul.f32 %v50, %v54
    %v56 = vmul.f32 %v49, %v55
    %vm57 = vcmp.eq.f32.partialorder %v49, inf
    %v58 = vsel %vm57, %v49, %v56
    %vm59 = vcmp.eq.f32.partialorder %v49, 0.0
    %v60 = vand.u32 %v49, 2147483648
    %v61 = vsel %vm59, %v60, %v58
    %v62 = vsub.f32 1.0, %v61
    %v63 = vmax.f32 %v62, 0.0
    %v64 = vld [vmem:[%s2] sm:$0xff]
    %v65 = vmul.f32 %v61, %v61
    %v66 = vmul.f32 %v64, %v65
    %v67 = vsub.f32 1.0, %v64
    %v68 = vmul.f32 %v63, %v63
    %v69 = vmul.f32 %v67, %v68
    %v70 = vadd.f32 %v66, %v69
    %v71 = vlaneseq
    %v72 = vshrl.u32 %v71, 7
    %s73 = smul.u32 0, 8
    %v74 = vstv %s73
    %v75 = vadd.s32 %v72, %v74
    %vm76 = vcmp.lt.s32.totalorder %v75, 6
    %v77 = vsel %vm76, %v70, 0.0
    %v78 = vld [vmem:[#allocation2] sm:$0x1]
    %vm79 = vcmask 7168
    %v80 = vsel %vm79, %v77, 0.0
    %v81 = vrot.slane %v80, 4
    %v82 = vadd.f32 %v80, %v81
    %v83 = vrot.slane %v82, 2
    %v84 = vadd.f32 %v82, %v83
    %v85 = vrot.slane %v84, 1
    %v86 = vadd.f32 %v84, %v85
    %v87 = vadd.f32 %v78, %v86
    %vm88 = vcmask 0
    %89 = vst.msk [vmem:[#allocation2] sm:$0x1] %vm88, %v87
    // Predicated region
    $region26: #{contrastive_loss_mahalanobis.1} parent=1 // pred_check
      %p90 = pneg %p21
    $region27: #{contrastive_loss_mahalanobis.1} parent=1 // pred_check_branch
      %92 = sbr.rel (%p90) target = $region29
    $region28: #{contrastive_loss_mahalanobis.1} parent=1 // pred_region
      %v93 = vld [vmem:[#allocation2] sm:$0x1]
      %v94 = vmul.f32 %v93, 0.16666667
      %95 = vst.msk [vmem:[#allocation3] sm:$0x1] %vm88, %v94
    $region29: #{contrastive_loss_mahalanobis.1} parent=1 // pred_fallthru
      _
    // Predicated region
    $region30: #{contrastive_loss_mahalanobis.1} parent=1 // pred_check
      _
    $region31: #{contrastive_loss_mahalanobis.1} parent=1 // pred_check_branch
      %97 = sbr.rel (0) target = $region33
    $region32: #{contrastive_loss_mahalanobis.1} parent=1 // pred_region
      %99 = vsyncadd [#allocation4], 0
      %s101 = sshll.u32 [#allocation3], 4
      %s102 = int_to_ptr.vmem [resolvable:$true] %s101
      %s103 = sshll.u32 %s5, 4
      %s104 = int_to_ptr.hbm [resolvable:$true] %s103
      %106 = dma.vmem_to_hbm [thread:$0]  %s102, 16, %s104, [#allocation4]
    $region33: #{contrastive_loss_mahalanobis.1} parent=1 // pred_fallthru
      _
    // Predicated region
    $region34: #{contrastive_loss_mahalanobis.1} parent=1 // pred_check
      _
    $region35: #{contrastive_loss_mahalanobis.1} parent=1 // pred_check_branch
      %108 = sbr.rel (0) target = $region37
    $region36: #{contrastive_loss_mahalanobis.1} parent=1 // pred_region
      %110 = dma.done [#allocation4], 16
    $region37: #{contrastive_loss_mahalanobis.1} parent=1 // pred_fallthru
      _
    %111 = vsyncpa [#allocation4], 1

</llo_original>
